<compile_context>
chip_gen: v7x
topology: tpu7x:2x2x1
jax: 0.10.0
libtpu: 0.0.40
codegen_flags: <defaults>
</compile_context>

<pallas_src>
import functools
import math
import warnings

import jax
import jax.numpy as jnp
from jax import lax
from jax.experimental import pallas as pl
from jax.experimental.pallas import tpu as pltpu


def _round_up(x, m):
    return (x + m - 1) // m * m


def _sine_embed_kernel(t_ref, aux_ref, out_ref, *, feats, pack):
    """out[r, s*F + f] = sin(t[r, s] * inv_dim_t[f] + phase[f]).

    t_ref  : (tile_r, pack)  f32 -- `pack` consecutive t_embed values per row
    aux_ref: (2, lanes)      f32 -- row 0: 1/dim_t tiled, row 1: phase tiled
    out_ref: (tile_r, lanes)     -- lane-dense when lanes % 128 == 0
    """
    lanes = feats * pack
    aux = aux_ref[...]
    inv = aux[0:1, :]                                   # (1, lanes)
    phase = aux[1:2, :]                                 # (1, lanes)

    # Per-lane select of the packed t column.  The compare runs once on a
    # (1, lanes) iota (constant thresholds); only the (pack-1) selects touch
    # the full tile, everything else broadcasts over rows.
    t_sel = t_ref[:, 0:1]                               # (rows, 1)
    if pack > 1:
        lane = lax.broadcasted_iota(jnp.int32, (1, lanes), 1)
        for s in range(1, pack):
            t_sel = jnp.where(lane >= s * feats, t_ref[:, s:s + 1], t_sel)

    # One mul + one add + one sin per element (cos folded in via phase).
    arg = t_sel * inv + phase
    out_ref[...] = jnp.sin(arg).astype(out_ref.dtype)


class PositionEmbeddingSinePallas:
    """Pallas TPU port of PositionEmbeddingSine (no learned parameters)."""

    def __init__(self, num_pos_feats=64, temperature=10000, normalize=False,
                 scale=None, out_dtype=jnp.float32, pallas_min_elems=1 << 20):
        self.num_pos_feats = num_pos_feats
        self.temperature = temperature
        self.normalize = normalize
        if scale is not None and normalize is False:
            raise ValueError("normalize should be True if scale is passed")
        if scale is None:
            scale = 2 * math.pi
        self.scale = scale
        self.out_dtype = out_dtype           # bf16 halves HBM writeback (v5e win)
        # Below this many output elements the pure-JAX path is used (the
        # pallas_call dispatch + XLA glue dominates at tiny sizes).
        self.pallas_min_elems = pallas_min_elems

    # ------------------------------------------------------------------ #
    def __call__(self, x, mask):
        # x: (B, C, T) -- unused (PyTorch only uses it for device/dtype)
        # mask: (B, T) bool -- True where padded
        del x
        mask = mask.astype(bool)
        B, T = mask.shape

        # Even feature count actually computed; odd case zero-padded after
        # (mirrors the torch.cat with a zero column in the reference module).
        F = self.num_pos_feats - (self.num_pos_feats % 2)
        if F == 0:
            return jnp.zeros((B, T, self.num_pos_feats), self.out_dtype)

        # ---- tiny (B, T) preprocessing in plain JAX (glue, O(B*T)) ----
        not_mask = jnp.logical_not(mask).astype(jnp.float32)
        t_embed = jnp.cumsum(not_mask, axis=1)                      # (B, T)
        if self.normalize:
            t_embed = t_embed / (t_embed[:, -1:] + 1e-6) * self.scale

        i = jnp.arange(F, dtype=jnp.float32)
        dim_t = jnp.asarray(self.temperature, jnp.float32) ** (
            2.0 * jnp.floor(i / 2.0) / F)
        inv_dim_t = 1.0 / dim_t                                      # (F,)
        phase = (jnp.arange(F) % 2).astype(jnp.float32) * (math.pi / 2.0)

        if B * T * F < self.pallas_min_elems:
            # small-shape fast path: dispatch overhead > kernel work
            arg = t_embed[:, :, None] * inv_dim_t[None, None, :] + phase[None, None, :]
            pos = jnp.sin(arg).astype(self.out_dtype)
        else:
            pos = self._pallas_forward(t_embed, inv_dim_t, phase, B, T, F)

        if self.num_pos_feats % 2 == 0:
            return pos
        padding = jnp.zeros((B, T, 1), self.out_dtype)
        return jnp.concatenate([pos, padding], axis=2)

    # ------------------------------------------------------------------ #
    def _pallas_forward(self, t_embed, inv_dim_t, phase, B, T, F):
        # ---- lane packing: make the kernel's last dim a multiple of 128 ----
        if F % 128 == 0:
            pack = 1                                   # already lane-dense
        else:
            pack = (F * 128 // math.gcd(F, 128)) // F  # lcm(F,128) / F
            if pack * F > 1024:
                warnings.warn(
                    "PositionEmbeddingSinePallas: feature width %d does not pack "
                    "to a <=1024-lane multiple of 128; falling back to masked "
                    "stores (slower)." % F)
                pack = 1
        lanes = pack * F
        out_itemsize = jnp.dtype(self.out_dtype).itemsize
        row_align = 8 if out_itemsize == 4 else 16

        # Pad T only when packing genuinely requires it; the wrapper-side
        # slice afterwards re-streams the output through HBM, so keep it rare.
        T_pad = _round_up(T, pack)
        if T_pad != T:
            t_embed = jnp.pad(t_embed, ((0, 0), (0, T_pad - T)))

        R = B * (T_pad // pack)                        # independent rows
        t_cols = t_embed.reshape(R, pack)              # t_cols[r, s] = t[b, p*pack+s]
        aux = jnp.stack([jnp.tile(inv_dim_t, pack),
                         jnp.tile(phase, pack)], axis=0)             # (2, lanes)

        # ---- row tiling: budget live VMEM (double-buffered output tile +
        # the lane-padded (tile_r, 128) t tile) to ~12 MiB; cap 8192 rows. ----
        bytes_per_row = 2 * lanes * out_itemsize + 2 * 128 * 4
        tile_r = (12 * 1024 * 1024 // bytes_per_row) // row_align * row_align
        tile_r = max(row_align, min(8192, tile_r))
        if R >= 2048:
            # keep >=4 grid steps so both v7x TensorCores get work and the
            # pipeline has something to overlap
            tile_r = min(tile_r, _round_up(-(-R // 4), row_align))
        tile_r = min(tile_r, R)                        # single full block if small

        grid = (pl.cdiv(R, tile_r),)
        kernel = functools.partial(_sine_embed_kernel, feats=F, pack=pack)
        out_flat = pl.pallas_call(
            kernel,
            out_shape=jax.ShapeDtypeStruct((R, lanes), self.out_dtype),
            grid=grid,
            in_specs=[
                pl.BlockSpec((tile_r, pack), lambda r: (r, 0)),
                pl.BlockSpec((2, lanes), lambda r: (0, 0)),
            ],
            out_specs=pl.BlockSpec((tile_r, lanes), lambda r: (r, 0)),
            compiler_params=pltpu.CompilerParams(
                dimension_semantics=("parallel",),      # row tiles are independent
                vmem_limit_bytes=32 * 1024 * 1024,      # covers v5e's 16 MiB default
            ),
        )(t_cols, aux)

        pos = out_flat.reshape(B, T_pad, F)            # contiguous reshape (free)
        if T_pad != T:
            pos = pos[:, :T, :]
        return pos


# ---------------------------------------------------------------------- #
def _reference(mask, num_pos_feats, temperature, normalize, scale):
    """Pure-JAX mirror of the PyTorch forward (sin/cos + divide), for checking."""
    not_mask = (~mask).astype(jnp.float32)
    t_embed = jnp.cumsum(not_mask, axis=1)
    if normalize:
        t_embed = t_embed / (t_embed[:, -1:] + 1e-6) * scale
    F = num_pos_feats if num_pos_feats % 2 == 0 else num_pos_feats - 1
    i = jnp.arange(F, dtype=jnp.float32)
    dim_t = temperature ** (2.0 * jnp.floor(i / 2.0) / F)
    arg = t_embed[:, :, None] / dim_t
    pos = jnp.stack([jnp.sin(arg[:, :, 0::2]), jnp.cos(arg[:, :, 1::2])],
                    axis=3).reshape(arg.shape[0], arg.shape[1], F)
    if num_pos_feats % 2 == 0:
        return pos
    pad = jnp.zeros(pos.shape[:2] + (1,), jnp.float32)
    return jnp.concatenate([pos, pad], axis=2)


if __name__ == "__main__":
    key = jax.random.PRNGKey(0)
    B, C, T = 2, 4, 16

    kx, _ = jax.random.split(key)
    x = jax.random.normal(kx, (B, C, T), dtype=jnp.float32)
    # Padding mask: each batch row has a valid prefix, the tail is padded.
    valid_len = jnp.array([T, T - 5], dtype=jnp.int32)
    mask = jnp.arange(T)[None, :] >= valid_len[:, None]              # (B, T) bool

    # 1) default config, forced through the Pallas kernel (pack=2, lanes=128)
    mod = PositionEmbeddingSinePallas(num_pos_feats=64, pallas_min_elems=0)
    out = jax.block_until_ready(mod(x, mask))
    ref = _reference(mask, 64, 10000, False, 2 * math.pi)
    assert out.shape == (B, T, 64), out.shape
    assert jnp.allclose(out, ref, atol=5e-5, rtol=1e-5)

    # 2) odd num_pos_feats + normalize + T not a multiple of pack (pad/slice path)
    T2 = 15
    mask2 = jnp.arange(T2)[None, :] >= jnp.array([T2, T2 - 4])[:, None]
    x2 = jnp.zeros((B, C, T2), jnp.float32)
    mod2 = PositionEmbeddingSinePallas(num_pos_feats=33, normalize=True,
                                       pallas_min_elems=0)
    out2 = jax.block_until_ready(mod2(x2, mask2))
    ref2 = _reference(mask2, 33, 10000, True, 2 * math.pi)
    assert out2.shape == (B, T2, 33), out2.shape
    assert jnp.allclose(out2, ref2, atol=5e-5, rtol=1e-5)

    # 3) multi-step grid (R >= 2048 -> 4 grid steps, exercises tiling/pipelining)
    T3 = 2048
    mask3 = jnp.arange(T3)[None, :] >= jnp.array([T3, T3 - 300])[:, None]
    x3 = jnp.zeros((B, C, T3), jnp.float32)
    mod3 = PositionEmbeddingSinePallas(num_pos_feats=64, normalize=True,
                                       pallas_min_elems=0)
    out3 = jax.block_until_ready(mod3(x3, mask3))
    ref3 = _reference(mask3, 64, 10000, True, 2 * math.pi)
    assert out3.shape == (B, T3, 64), out3.shape
    assert jnp.allclose(out3, ref3, atol=5e-5, rtol=1e-5)

    # 4) bf16 output option (v5e HBM-writeback win); loose tolerance for bf16
    mod4 = PositionEmbeddingSinePallas(num_pos_feats=64, out_dtype=jnp.bfloat16,
                                       pallas_min_elems=0)
    out4 = jax.block_until_ready(mod4(x, mask))
    assert out4.dtype == jnp.bfloat16
    assert jnp.allclose(out4.astype(jnp.float32), ref, atol=2e-2, rtol=2e-2)

    # 5) small-shape fast path (default threshold skips the kernel entirely)
    mod5 = PositionEmbeddingSinePallas(num_pos_feats=64)
    out5 = jax.block_until_ready(mod5(x, mask))
    assert jnp.allclose(out5, ref, atol=5e-5, rtol=1e-5)

    print("KERNEL_OK")
</pallas_src>

<mosaic_0001>
module attributes {stable_mosaic.version = 11 : i64} {
  func.func @_sine_embed_kernel(%arg0: i32, %arg1: memref<16x2xf32, #tpu.memory_space<vmem>>, %arg2: memref<2x128xf32, #tpu.memory_space<vmem>>, %arg3: memref<16x128xf32, #tpu.memory_space<vmem>>) attributes {dimension_semantics = [#tpu.dimension_semantics<parallel>], iteration_bounds = array<i64: 1>, scalar_prefetch = 0 : i64, scratch_operands = 0 : i64, tpu.core_type = #tpu.core_type<tc>, window_params = [{transform_indices = @transform_0, window_bounds = array<i64: 16, 2>}, {pipeline_mode = #tpu.pipeline_mode<synchronous>, transform_indices = @transform_1, window_bounds = array<i64: 2, 128>}, {transform_indices = @transform_2, window_bounds = array<i64: 16, 128>}]} {
    %c0 = arith.constant 0 : index
    %c0_0 = arith.constant 0 : index
    %0 = vector.load %arg2[%c0, %c0_0] : memref<2x128xf32, #tpu.memory_space<vmem>>, vector<2x128xf32>
    %1 = vector.extract_strided_slice %0 {offsets = [0, 0], sizes = [1, 128], strides = [1, 1]} : vector<2x128xf32> to vector<1x128xf32>
    %2 = vector.extract_strided_slice %0 {offsets = [1, 0], sizes = [1, 128], strides = [1, 1]} : vector<2x128xf32> to vector<1x128xf32>
    %c0_1 = arith.constant 0 : index
    %c0_2 = arith.constant 0 : index
    %3 = vector.load %arg1[%c0_1, %c0_2] : memref<16x2xf32, #tpu.memory_space<vmem>>, vector<16x1xf32>
    %4 = tpu.iota {dimensions = array<i32: 1>} : vector<1x128xi32>
    %c64_i32 = arith.constant 64 : i32
    %5 = vector.broadcast %c64_i32 : i32 to vector<1x128xi32>
    %6 = arith.cmpi sge, %4, %5 : vector<1x128xi32>
    %c0_3 = arith.constant 0 : index
    %c1 = arith.constant 1 : index
    %7 = vector.load %arg1[%c0_3, %c1] : memref<16x2xf32, #tpu.memory_space<vmem>>, vector<16x1xf32>
    %8 = vector.shape_cast %6 : vector<1x128xi1> to vector<1x128xi1>
    %9 = vector.broadcast %8 : vector<1x128xi1> to vector<16x128xi1>
    %10 = vector.shape_cast %7 : vector<16x1xf32> to vector<16x1xf32>
    %11 = vector.broadcast %10 : vector<16x1xf32> to vector<16x128xf32>
    %12 = vector.shape_cast %3 : vector<16x1xf32> to vector<16x1xf32>
    %13 = vector.broadcast %12 : vector<16x1xf32> to vector<16x128xf32>
    %14 = arith.select %9, %11, %13 : vector<16x128xi1>, vector<16x128xf32>
    %15 = vector.broadcast %1 : vector<1x128xf32> to vector<16x128xf32>
    %16 = arith.mulf %14, %15 : vector<16x128xf32>
    %17 = vector.broadcast %2 : vector<1x128xf32> to vector<16x128xf32>
    %18 = arith.addf %16, %17 : vector<16x128xf32>
    %19 = math.sin %18 : vector<16x128xf32>
    %c0_4 = arith.constant 0 : index
    %c0_5 = arith.constant 0 : index
    %20 = vector.load %arg3[%c0_4, %c0_5] : memref<16x128xf32, #tpu.memory_space<vmem>>, vector<16x128xf32>
    tpu.vector_store %arg3[%c0_4, %c0_5], %19 {strides = array<i32>} : memref<16x128xf32, #tpu.memory_space<vmem>>, vector<16x128xf32>,
    return
  }
  func.func @transform_0(%arg0: i32) -> (i32, i32) {
    %c0_i32 = arith.constant 0 : i32
    %c0_i32_0 = arith.constant 0 : i32
    return %arg0, %c0_i32 : i32, i32
  }
  func.func @transform_1(%arg0: i32) -> (i32, i32) {
    %c0_i32 = arith.constant 0 : i32
    %c0_i32_0 = arith.constant 0 : i32
    %c0_i32_1 = arith.constant 0 : i32
    return %c0_i32, %c0_i32_0 : i32, i32
  }
  func.func @transform_2(%arg0: i32) -> (i32, i32) {
    %c0_i32 = arith.constant 0 : i32
    %c0_i32_0 = arith.constant 0 : i32
    return %arg0, %c0_i32 : i32, i32
  }
}

</mosaic_0001>

<llo_original>
// kernel: tpu_custom_call.1
$region0: #{tpu_custom_call.1}
  #allocation0 [shape = 'u32[]', space=smem, size = 0x4, offset = 0x4, fixed_abs, tag = 'smem constant byte address 0x4 - core index']
  #allocation1 [shape = 'u32[144,128]{1,0:T(1,128)}', space=vmem, size = 0x12000, scoped, tag = 'internal scratch']
  %s0 = inlined_call_operand.vmem [shape: f32[16,2], index: 0, kind: input, shape index: {}]
  %s1 = inlined_call_operand.vmem [shape: f32[2,128], index: 1, kind: input, shape index: {}]
  %s2 = inlined_call_operand.hbm [shape: f32[16,128], index: 2, kind: output, shape index: {}]
  %s3 = sld [smem:[#allocation0]]
  $region18: #{tpu_custom_call.1} parent=0
    _
  %s5 = ssub.s32 1, %s3
  %s6 = scalar_select 0, %s5, %s3
  $region1: #{tpu_custom_call.1} parent=0
    #allocation2 [shape = 'u8[8192]{0}', space=vmem, size = 0x2000, scoped, tag = 'output window, operand 0, single buffered']
    #allocation3 [shape = 's32[1]{0}', space=sflag, size = 0x4, scoped, tag = 'scoped memory for tpu_custom_call.1']
    %7 = vsyncpa [#allocation3], 0
    // Predicated region
    $region2: #{tpu_custom_call.1} parent=1 // pred_check
      _
    $region3: #{tpu_custom_call.1} parent=1 // pred_check_branch
      %9 = sbr.rel (0) target = $region5
    $region4: #{tpu_custom_call.1} parent=1 // pred_region
      _
    $region5: #{tpu_custom_call.1} parent=1 // pred_fallthru
      _
    // Predicated region
    $region6: #{tpu_custom_call.1} parent=1 // pred_check
      _
    $region7: #{tpu_custom_call.1} parent=1 // pred_check_branch
      %11 = sbr.rel (0) target = $region9
    $region8: #{tpu_custom_call.1} parent=1 // pred_region
      _
    $region9: #{tpu_custom_call.1} parent=1 // pred_fallthru
      _
    %v12 = vld [vmem:[%s1] sm:$0x3]
    %v13 = vld [vmem:[%s0] sm:$0xff]
    %v14 = vld [vmem:[%s0 + $0x8] sm:$0xff]
    %v15 = vlaneseq
    %v16 = vand.u32 %v15, 127
    %vm17 = vcmp.ge.s32.totalorder %v16, 64
    %v18 = vsel %vm17, 1, 0
    %vm19 = vcmp.eq.s32.totalorder %v18, 1
    %21 = vset.pattern.permute.xlu0 1
    %22 = vperm.xlu0 %21, %v13
    %v23 = vpop.permute.xlu0 %22
    %26 = vset.pattern.permute.xlu0 1
    %27 = vperm.xlu0 %26, %v14
    %v28 = vpop.permute.xlu0 %27
    %30 = vset.pattern.permute.xlu0 0
    %31 = vperm.xlu0 %30, %v13
    %v32 = vpop.permute.xlu0 %31
    %34 = vset.pattern.permute.xlu0 0
    %35 = vperm.xlu0 %34, %v14
    %v36 = vpop.permute.xlu0 %35
    %v38 = vsel %vm19, %v23, %v32
    %v39 = vsel %vm19, %v28, %v36
    %v40 = vlaneseq
    %v41 = vshrl.u32 %v40, 7
    %v42 = vsub.s32 0, %v41
    %v43 = vrot.slane %v12, %v42
    %v44 = vmul.f32 %v38, %v43
    %v45 = vmul.f32 %v39, %v43
    %v46 = vlaneseq
    %v47 = vshrl.u32 %v46, 7
    %v48 = vsub.s32 1, %v47
    %v49 = vrot.slane %v12, %v48
    %v50 = vadd.f32 %v44, %v49
    %v51 = vadd.f32 %v45, %v49
    %v52 = vand.u32 2147483647, %v50
    %vm53 = vcmp.le.f32.partialorder %v52, 0.7853982
    %vm54 = vcmp.lt.s32.totalorder %v50, 0
    %v55 = vand.u32 %v50, 2139095040
    %v56 = vshrl.u32 %v55, 23
    %v57 = vsub.s32 %v56, 127
    %v58 = vand.u32 2147483647, %v50
    %v59 = vand.u32 %v58, 8388607
    %v60 = vor.u32 %v59, 8388608
    %v61 = vsub.s32 0, %v60
    %v62 = vadd.s32 %v57, 1
    %vm63 = vcmp.gt.s32.totalorder %v62, 0
    %v64 = vsel %vm63, %v62, 0
    %v65 = vshrl.u32 %v64, 5
    %v66 = vand.u32 %v64, 31
    %v67 = vsub.s32 32, %v66
    %v68 = vshrl.u32 683565275, %v67
    %v69 = vshll.u32 683565275, %v66
    %v70 = vshrl.u32 2475754826, %v67
    %v71 = vor.u32 %v69, %v70
    %v72 = vshll.u32 2475754826, %v66
    %v73 = vshrl.u32 2131351028, %v67
    %v74 = vor.u32 %v72, %v73
    %v75 = vshll.u32 2131351028, %v66
    %v76 = vshrl.u32 2102212464, %v67
    %v77 = vor.u32 %v75, %v76
    %v78 = vshll.u32 2102212464, %v66
    %v79 = vshrl.u32 920167782, %v67
    %v80 = vor.u32 %v78, %v79
    %v81 = vshll.u32 920167782, %v66
    %v82 = vshrl.u32 1326507024, %v67
    %v83 = vor.u32 %v81, %v82
    %vm84 = vcmp.lt.s32.totalorder %v65, 1
    %vm85 = vcmp.lt.s32.totalorder %v65, 2
    %vm86 = vcmp.lt.s32.totalorder %v65, 3
    %vm87 = vcmp.lt.s32.totalorder %v65, 4
    %v88 = vsel %vm84, %v68, %v71
    %v89 = vsel %vm87, %v77, 2102212464
    %v90 = vsel %vm86, %v74, %v89
    %v91 = vsel %vm85, %v88, %v90
    %v92 = vsel %vm84, %v71, %v74
    %v93 = vsel %vm87, %v80, 920167782
    %v94 = vsel %vm86, %v77, %v93
    %v95 = vsel %vm85, %v92, %v94
    %v96 = vsel %vm84, %v74, %v77
    %v97 = vsel %vm87, %v83, 1326507024
    %v98 = vsel %vm86, %v80, %v97
    %v99 = vsel %vm85, %v96, %v98
    %v100 = vshll.u32 %v60, 8
    %v101 = vmul.u32.u64.compose %v100, %v99
    %v102 = vextract.low.u32 %v101
    %v103 = vextract.high.u32 %v101
    %v104 = vmul.u32.u64.compose %v100, %v95
    %v105 = vextract.low.u32 %v104
    %v106 = vextract.high.u32 %v104
    %v107 = vmul.u32 %v100, %v91
    %v108 = vadd.s32 %v103, %v105
    %vm109 = vc.u32 %v103, %v105
    %v110 = vadd.s32 %v106, 1
    %v111 = vsel %vm109, %v110, %v106
    %v112 = vadd.s32 %v107, %v111
    %v113 = vadd.s32 %v112, 536870912
    %v114 = vshrl.u32 %v113, 30
    %v115 = vshll.u32 %v114, 30
    %v116 = vsub.s32 %v112, %v115
    %vm117 = vcmp.lt.s32.totalorder %v116, 0
    %v118 = vsub.s32 0, %v116
    %v119 = vsel %vm117, %v118, %v116
    %v120 = vclz %v119
    %v121 = vsub.s32 %v120, 2
    %vm122 = vcmp.gt.s32.totalorder 0, %v121
    %v123 = vsel %vm122, 0, %v121
    %v124 = vsub.s32 32, %v123
    %v125 = vshll.u32 %v116, %v123
    %v126 = vshrl.u32 %v108, %v124
    %v127 = vor.u32 %v125, %v126
    %v128 = vsub.s32 4294967266, %v123
    %v129 = vadd.s32 %v128, 127
    %v130 = vshll.u32 %v129, 23
    %v131 = vor.u32 4788187, %v130
    %v132 = vand.u32 2147483647, %v131
    %v134 = vcvt.s32.f32 %v127
    %v135 = vmul.f32 %v134, %v132
    %v136 = vxor.u32 %v135, 2147483648
    %v137 = vsel %vm54, %v136, %v135
    %v138 = vsub.s32 4, %v114
    %v139 = vsel %vm54, %v138, %v114
    %v140 = vsel %vm53, %v50, %v137
    %v141 = vsel %vm53, 0, %v139
    %v142 = vcosq.f32.pop %v140
    %v143 = vsinq.f32.pop %v140
    %vm144 = vweird.f32 %v50
    %v145 = vadd.s32 %v141, 3
    %v146 = vand.u32 %v145, 3
    %vm147 = vcmp.lt.s32.totalorder %v146, 2
    %vm148 = vcmp.eq.s32.totalorder %v146, 0
    %v149 = vxor.u32 %v143, 2147483648
    %v150 = vsel %vm148, %v142, %v149
    %vm151 = vcmp.eq.s32.totalorder %v146, 2
    %v152 = vxor.u32 %v142, 2147483648
    %v153 = vsel %vm151, %v152, %v143
    %v154 = vsel %vm147, %v150, %v153
    %v155 = vsel %vm144, nan, %v154
    %v156 = vand.u32 2147483647, %v51
    %vm157 = vcmp.le.f32.partialorder %v156, 0.7853982
    %vm158 = vcmp.lt.s32.totalorder %v51, 0
    %v159 = vand.u32 %v51, 2139095040
    %v160 = vshrl.u32 %v159, 23
    %v161 = vsub.s32 %v160, 127
    %v162 = vand.u32 2147483647, %v51
    %v163 = vand.u32 %v162, 8388607
    %v164 = vor.u32 %v163, 8388608
    %v165 = vsub.s32 0, %v164
    %v166 = vadd.s32 %v161, 1
    %vm167 = vcmp.gt.s32.totalorder %v166, 0
    %v168 = vsel %vm167, %v166, 0
    %v169 = vshrl.u32 %v168, 5
    %v170 = vand.u32 %v168, 31
    %v171 = vsub.s32 32, %v170
    %v172 = vshrl.u32 683565275, %v171
    %v173 = vshll.u32 683565275, %v170
    %v174 = vshrl.u32 2475754826, %v171
    %v175 = vor.u32 %v173, %v174
    %v176 = vshll.u32 2475754826, %v170
    %v177 = vshrl.u32 2131351028, %v171
    %v178 = vor.u32 %v176, %v177
    %v179 = vshll.u32 2131351028, %v170
    %v180 = vshrl.u32 2102212464, %v171
    %v181 = vor.u32 %v179, %v180
    %v182 = vshll.u32 2102212464, %v170
    %v183 = vshrl.u32 920167782, %v171
    %v184 = vor.u32 %v182, %v183
    %v185 = vshll.u32 920167782, %v170
    %v186 = vshrl.u32 1326507024, %v171
    %v187 = vor.u32 %v185, %v186
    %vm188 = vcmp.lt.s32.totalorder %v169, 1
    %vm189 = vcmp.lt.s32.totalorder %v169, 2
    %vm190 = vcmp.lt.s32.totalorder %v169, 3
    %vm191 = vcmp.lt.s32.totalorder %v169, 4
    %v192 = vsel %vm188, %v172, %v175
    %v193 = vsel %vm191, %v181, 2102212464
    %v194 = vsel %vm190, %v178, %v193
    %v195 = vsel %vm189, %v192, %v194
    %v196 = vsel %vm188, %v175, %v178
    %v197 = vsel %vm191, %v184, 920167782
    %v198 = vsel %vm190, %v181, %v197
    %v199 = vsel %vm189, %v196, %v198
    %v200 = vsel %vm188, %v178, %v181
    %v201 = vsel %vm191, %v187, 1326507024
    %v202 = vsel %vm190, %v184, %v201
    %v203 = vsel %vm189, %v200, %v202
    %v204 = vshll.u32 %v164, 8
    %v205 = vmul.u32.u64.compose %v204, %v203
    %v206 = vextract.low.u32 %v205
    %v207 = vextract.high.u32 %v205
    %v208 = vmul.u32.u64.compose %v204, %v199
    %v209 = vextract.low.u32 %v208
    %v210 = vextract.high.u32 %v208
    %v211 = vmul.u32 %v204, %v195
    %v212 = vadd.s32 %v207, %v209
    %vm213 = vc.u32 %v207, %v209
    %v214 = vadd.s32 %v210, 1
    %v215 = vsel %vm213, %v214, %v210
    %v216 = vadd.s32 %v211, %v215
    %v217 = vadd.s32 %v216, 536870912
    %v218 = vshrl.u32 %v217, 30
    %v219 = vshll.u32 %v218, 30
    %v220 = vsub.s32 %v216, %v219
    %vm221 = vcmp.lt.s32.totalorder %v220, 0
    %v222 = vsub.s32 0, %v220
    %v223 = vsel %vm221, %v222, %v220
    %v224 = vclz %v223
    %v225 = vsub.s32 %v224, 2
    %vm226 = vcmp.gt.s32.totalorder 0, %v225
    %v227 = vsel %vm226, 0, %v225
    %v228 = vsub.s32 32, %v227
    %v229 = vshll.u32 %v220, %v227
    %v230 = vshrl.u32 %v212, %v228
    %v231 = vor.u32 %v229, %v230
    %v232 = vsub.s32 4294967266, %v227
    %v233 = vadd.s32 %v232, 127
    %v234 = vshll.u32 %v233, 23
    %v235 = vor.u32 4788187, %v234
    %v236 = vand.u32 2147483647, %v235
    %v238 = vcvt.s32.f32 %v231
    %v239 = vmul.f32 %v238, %v236
    %v240 = vxor.u32 %v239, 2147483648
    %v241 = vsel %vm158, %v240, %v239
    %v242 = vsub.s32 4, %v218
    %v243 = vsel %vm158, %v242, %v218
    %v244 = vsel %vm157, %v51, %v241
    %v245 = vsel %vm157, 0, %v243
    %v246 = vcosq.f32.pop %v244
    %v247 = vsinq.f32.pop %v244
    %vm248 = vweird.f32 %v51
    %v249 = vadd.s32 %v245, 3
    %v250 = vand.u32 %v249, 3
    %vm251 = vcmp.lt.s32.totalorder %v250, 2
    %vm252 = vcmp.eq.s32.totalorder %v250, 0
    %v253 = vxor.u32 %v247, 2147483648
    %v254 = vsel %vm252, %v246, %v253
    %vm255 = vcmp.eq.s32.totalorder %v250, 2
    %v256 = vxor.u32 %v246, 2147483648
    %v257 = vsel %vm255, %v256, %v247
    %v258 = vsel %vm251, %v254, %v257
    %v259 = vsel %vm248, nan, %v258
    %260 = vst [vmem:[#allocation2] sm:$0xff] %v155
    %261 = vst [vmem:[#allocation2 + $0x8] sm:$0xff] %v259
    // Predicated region
    $region10: #{tpu_custom_call.1} parent=1 // pred_check
      _
    $region11: #{tpu_custom_call.1} parent=1 // pred_check_branch
      %263 = sbr.rel (0) target = $region13
    $region12: #{tpu_custom_call.1} parent=1 // pred_region
      %s265 = ssub.s32 256, 256
      %266 = vsyncadd [#allocation3], %s265
      %s267 = sshll.u32 [#allocation2], 4
      %s268 = int_to_ptr.vmem [resolvable:$true] %s267
      %273 = dma.vmem_to_hbm [thread:$0]  %s268, 256, %s2, [#allocation3], 128, 128, 8
    $region13: #{tpu_custom_call.1} parent=1 // pred_fallthru
      _
    // Predicated region
    $region14: #{tpu_custom_call.1} parent=1 // pred_check
      _
    $region15: #{tpu_custom_call.1} parent=1 // pred_check_branch
      %275 = sbr.rel (0) target = $region17
    $region16: #{tpu_custom_call.1} parent=1 // pred_region
      %276 = dma.done [#allocation3], 256
    $region17: #{tpu_custom_call.1} parent=1 // pred_fallthru
      _
    %277 = vsyncpa [#allocation3], 1

</llo_original>
